<compile_context>
chip_gen: v6e
topology: v6e:2x2x1
jax: 0.10.0
libtpu: 0.0.40
codegen_flags: <defaults>
</compile_context>

<pallas_src>
import functools

import jax
import jax.numpy as jnp
from jax import lax
from jax.experimental import pallas as pl
from jax.experimental.pallas import tpu as pltpu

ALPHA = 0.8
GAMMA = 2.0                          # == 2 -> implemented as an explicit square
LANE = 128                           # lane width
MAX_BLOCK_BYTES = 4 * 1024 * 1024    # cap on one logits block (per buffer)
TS_MAX = 1024                        # at most 1024 * 128 = 131072 pixels / tile
VMEM_LIMIT_BYTES = 32 * 1024 * 1024  # safe on v5e/v6e (128 MiB) and v7x (64 MiB)


def _ce_partial_kernel(x_ref, t_ref, out_ref, *, chunk, s_valid, has_tail):
    """Per-tile sum of per-pixel cross entropy, written as a (1, 128) block.

    x_ref: (1, C, TS, 128) logits in native dtype; t_ref: (1, 1, TS, 128) int32.
    """
    _, C, TS, L = x_ref.shape
    n_chunks = TS // chunk
    t_idx = pl.program_id(1)

    def chunk_ce(r0, masked):
        tgt = t_ref[0, 0, pl.ds(r0, chunk), :]                     # (chunk, L) i32
        # Pass 1: running max over channels (exact in native dtype, no f32 copy).
        m = x_ref[0, 0, pl.ds(r0, chunk), :]
        for c in range(1, C):
            m = jnp.maximum(m, x_ref[0, c, pl.ds(r0, chunk), :])
        m32 = m.astype(jnp.float32)
        # Pass 2: shifted logits feed both the exp-sum and the target-logit
        # accumulators; one-hot is a scalar-constant compare (no 3-D iota,
        # no full-tile f32 temporaries).
        acc_e = jnp.zeros((chunk, L), jnp.float32)
        acc_t = jnp.zeros((chunk, L), jnp.float32)
        for c in range(C):
            shifted = x_ref[0, c, pl.ds(r0, chunk), :].astype(jnp.float32) - m32
            acc_e = acc_e + jnp.exp(shifted)
            acc_t = acc_t + jnp.where(tgt == c, shifted, 0.0)
        ce = jnp.log(acc_e) - acc_t                                # (chunk, L)
        if masked:
            # Rows at/after s_valid are garbage from the overhanging last
            # block; use a select so NaN/Inf can never leak into the sum.
            rem_rows = s_valid - t_idx * TS - r0
            row = lax.broadcasted_iota(jnp.int32, (chunk, L), 0)
            ce = jnp.where(row < rem_rows, ce, 0.0)
        return jnp.sum(ce, axis=0, keepdims=True)                  # (1, L)

    def tile_sum(masked):
        if n_chunks == 1:
            return chunk_ce(0, masked)

        def body(j, acc):
            return acc + chunk_ce(pl.multiple_of(j * chunk, chunk), masked)

        return lax.fori_loop(0, n_chunks, body, jnp.zeros((1, L), jnp.float32))

    if not has_tail:
        out_ref[0, 0] = tile_sum(False)
    else:
        is_last = t_idx == pl.num_programs(1) - 1

        @pl.when(jnp.logical_not(is_last))
        def _():
            out_ref[0, 0] = tile_sum(False)

        @pl.when(is_last)
        def _():
            out_ref[0, 0] = tile_sum(True)


def _ce_sum_main(x4, t4):
    """Sum of per-pixel CE over an (N, C, S, 128) logits / (N, 1, S, 128) target pair."""
    N, C, S, _ = x4.shape
    itemsize = jnp.dtype(x4.dtype).itemsize

    # Tile size: as many 128-pixel rows as fit under MAX_BLOCK_BYTES, capped at
    # TS_MAX; multiple of 8 unless it covers the whole S axis.
    ts = max(8, min(TS_MAX, MAX_BLOCK_BYTES // (C * LANE * itemsize)))
    ts = (ts // 8) * 8
    if S <= ts:
        TS, num_t = S, 1
    else:
        TS, num_t = ts, -(-S // ts)
    has_tail = (num_t * TS != S)

    # Sub-chunk the tile so the per-slab working set stays within the vregs.
    chunk = TS
    for cand in (32, 16, 8):
        if TS % cand == 0:
            chunk = cand
            break

    kernel = functools.partial(_ce_partial_kernel, chunk=chunk,
                               s_valid=S, has_tail=has_tail)

    partials = pl.pallas_call(
        kernel,
        out_shape=jax.ShapeDtypeStruct((N, num_t, 1, LANE), jnp.float32),
        grid_spec=pltpu.PrefetchScalarGridSpec(
            num_scalar_prefetch=0,
            grid=(N, num_t),
            in_specs=[
                pl.BlockSpec((1, C, TS, LANE), lambda n, t: (n, 0, t, 0)),
                pl.BlockSpec((1, 1, TS, LANE), lambda n, t: (n, 0, t, 0)),
            ],
            out_specs=pl.BlockSpec((1, 1, 1, LANE), lambda n, t: (n, t, 0, 0)),
        ),
        compiler_params=pltpu.CompilerParams(
            dimension_semantics=("parallel", "parallel"),
            vmem_limit_bytes=VMEM_LIMIT_BYTES,
        ),
    )(x4, t4)
    return jnp.sum(partials, dtype=jnp.float32)


def focal_loss(x_nchw, target_nhw):
    """x_nchw: (N, C, H, W) float logits; target_nhw: (N, H, W) int class ids."""
    N, C, H, W = x_nchw.shape
    HW = H * W
    S = HW // LANE                 # full 128-pixel rows per image
    hw_main = S * LANE
    rem = HW - hw_main             # leftover (< 128) pixels per image

    x3 = x_nchw.reshape(N, C, HW)                       # free reshape
    t2 = target_nhw.reshape(N, HW).astype(jnp.int32)    # free reshape

    ce_sum = jnp.float32(0.0)
    if S > 0:
        if rem:
            # TODO(synk): this slice is one extra HBM pass over the logits; it
            # replaces the previous full-tensor pad copy and only triggers when
            # H*W is not a multiple of 128 (rare for segmentation shapes).
            x_main = lax.slice_in_dim(x3, 0, hw_main, axis=2)
            t_main = lax.slice_in_dim(t2, 0, hw_main, axis=1)
        else:
            x_main, t_main = x3, t2
        x4 = x_main.reshape(N, C, S, LANE)               # free reshape
        t4 = t_main.reshape(N, 1, S, LANE)               # free reshape
        ce_sum = ce_sum + _ce_sum_main(x4, t4)

    if rem:
        # Ragged tail (< 128 pixels per image): tiny, plain JAX.
        xt = lax.slice_in_dim(x3, hw_main, HW, axis=2).astype(jnp.float32)  # (N,C,r)
        tt = lax.slice_in_dim(t2, hw_main, HW, axis=1)                      # (N,r)
        m = jnp.max(xt, axis=1)
        lse = jnp.log(jnp.sum(jnp.exp(xt - m[:, None, :]), axis=1)) + m
        tgt_logit = jnp.take_along_axis(xt, tt[:, None, :], axis=1)[:, 0, :]
        ce_sum = ce_sum + jnp.sum(lse - tgt_logit, dtype=jnp.float32)

    # Final mean CE + focal formula on scalars.
    bce = ce_sum / jnp.float32(N * HW)
    one_minus = 1.0 - jnp.exp(-bce)
    return ALPHA * (one_minus * one_minus) * bce          # gamma == 2 -> square


def _focal_loss_ref(x_nchw, target_nhw):
    """Pure-JAX reference matching torch.nn.CrossEntropyLoss + focal formula."""
    N, C, H, W = x_nchw.shape
    logits = jnp.transpose(x_nchw, (0, 2, 3, 1)).reshape(-1, C).astype(jnp.float32)
    tgt = target_nhw.reshape(-1)
    logp = jax.nn.log_softmax(logits, axis=-1)
    ce = -jnp.take_along_axis(logp, tgt[:, None], axis=-1)[:, 0]
    bce = jnp.mean(ce)
    bce_exp = jnp.exp(-bce)
    return ALPHA * (1.0 - bce_exp) ** GAMMA * bce


if __name__ == "__main__":
    key = jax.random.PRNGKey(0)
    k1, k2 = jax.random.split(key)
    N, C, H, W = 2, 4, 16, 16
    x = jax.random.normal(k1, (N, C, H, W), dtype=jnp.float32)
    target = jax.random.randint(k2, (N, H, W), 0, C, dtype=jnp.int32)

    loss = jax.jit(focal_loss)(x, target)
    jax.block_until_ready(loss)

    ref = _focal_loss_ref(x, target)
    assert jnp.allclose(loss, ref, atol=1e-5, rtol=1e-5), (loss, ref)
    print("KERNEL_OK")
</pallas_src>

<mosaic_0001>
module attributes {stable_mosaic.version = 11 : i64} {
  func.func @_ce_partial_kernel(%arg0: i32, %arg1: i32, %arg2: memref<1x4x2x128xf32, #tpu.memory_space<vmem>>, %arg3: memref<1x1x2x128xi32, #tpu.memory_space<vmem>>, %arg4: memref<1x1x1x128xf32, #tpu.memory_space<vmem>>) attributes {dimension_semantics = [#tpu.dimension_semantics<parallel>, #tpu.dimension_semantics<parallel>], iteration_bounds = array<i64: 2, 1>, scalar_prefetch = 0 : i64, scratch_operands = 0 : i64, tpu.core_type = #tpu.core_type<tc>, window_params = [{transform_indices = @transform_0, window_bounds = array<i64: 1, 4, 2, 128>}, {transform_indices = @transform_1, window_bounds = array<i64: 1, 1, 2, 128>}, {transform_indices = @transform_2, window_bounds = array<i64: 1, 1, 1, 128>}]} {
    %c0 = arith.constant 0 : index
    %c0_0 = arith.constant 0 : index
    %c0_1 = arith.constant 0 : index
    %c0_2 = arith.constant 0 : index
    %0 = vector.load %arg3[%c0, %c0_0, %c0_1, %c0_2] : memref<1x1x2x128xi32, #tpu.memory_space<vmem>>, vector<1x1x2x128xi32>
    %1 = vector.shape_cast %0 : vector<1x1x2x128xi32> to vector<2x128xi32>
    %c0_3 = arith.constant 0 : index
    %c0_4 = arith.constant 0 : index
    %c0_5 = arith.constant 0 : index
    %c0_6 = arith.constant 0 : index
    %2 = vector.load %arg2[%c0_3, %c0_4, %c0_5, %c0_6] : memref<1x4x2x128xf32, #tpu.memory_space<vmem>>, vector<1x1x2x128xf32>
    %3 = vector.shape_cast %2 : vector<1x1x2x128xf32> to vector<2x128xf32>
    %c0_7 = arith.constant 0 : index
    %c1 = arith.constant 1 : index
    %c0_8 = arith.constant 0 : index
    %c0_9 = arith.constant 0 : index
    %4 = vector.load %arg2[%c0_7, %c1, %c0_8, %c0_9] : memref<1x4x2x128xf32, #tpu.memory_space<vmem>>, vector<1x1x2x128xf32>
    %5 = vector.shape_cast %4 : vector<1x1x2x128xf32> to vector<2x128xf32>
    %6 = arith.maximumf %3, %5 : vector<2x128xf32>
    %c0_10 = arith.constant 0 : index
    %c2 = arith.constant 2 : index
    %c0_11 = arith.constant 0 : index
    %c0_12 = arith.constant 0 : index
    %7 = vector.load %arg2[%c0_10, %c2, %c0_11, %c0_12] : memref<1x4x2x128xf32, #tpu.memory_space<vmem>>, vector<1x1x2x128xf32>
    %8 = vector.shape_cast %7 : vector<1x1x2x128xf32> to vector<2x128xf32>
    %9 = arith.maximumf %6, %8 : vector<2x128xf32>
    %c0_13 = arith.constant 0 : index
    %c3 = arith.constant 3 : index
    %c0_14 = arith.constant 0 : index
    %c0_15 = arith.constant 0 : index
    %10 = vector.load %arg2[%c0_13, %c3, %c0_14, %c0_15] : memref<1x4x2x128xf32, #tpu.memory_space<vmem>>, vector<1x1x2x128xf32>
    %11 = vector.shape_cast %10 : vector<1x1x2x128xf32> to vector<2x128xf32>
    %12 = arith.maximumf %9, %11 : vector<2x128xf32>
    %cst = arith.constant 0.000000e+00 : f32
    %13 = vector.broadcast %cst : f32 to vector<2x128xf32>
    %cst_16 = arith.constant 0.000000e+00 : f32
    %14 = vector.broadcast %cst_16 : f32 to vector<2x128xf32>
    %c0_17 = arith.constant 0 : index
    %c0_18 = arith.constant 0 : index
    %c0_19 = arith.constant 0 : index
    %c0_20 = arith.constant 0 : index
    %15 = vector.load %arg2[%c0_17, %c0_18, %c0_19, %c0_20] : memref<1x4x2x128xf32, #tpu.memory_space<vmem>>, vector<1x1x2x128xf32>
    %16 = vector.shape_cast %15 : vector<1x1x2x128xf32> to vector<2x128xf32>
    %17 = arith.subf %16, %12 : vector<2x128xf32>
    %18 = math.exp %17 : vector<2x128xf32>
    %19 = arith.addf %13, %18 : vector<2x128xf32>
    %c0_i32 = arith.constant 0 : i32
    %20 = vector.broadcast %c0_i32 : i32 to vector<2x128xi32>
    %21 = arith.cmpi eq, %1, %20 : vector<2x128xi32>
    %cst_21 = arith.constant 0.000000e+00 : f32
    %22 = vector.broadcast %cst_21 : f32 to vector<2x128xf32>
    %23 = arith.select %21, %17, %22 : vector<2x128xi1>, vector<2x128xf32>
    %24 = arith.addf %14, %23 : vector<2x128xf32>
    %c0_22 = arith.constant 0 : index
    %c1_23 = arith.constant 1 : index
    %c0_24 = arith.constant 0 : index
    %c0_25 = arith.constant 0 : index
    %25 = vector.load %arg2[%c0_22, %c1_23, %c0_24, %c0_25] : memref<1x4x2x128xf32, #tpu.memory_space<vmem>>, vector<1x1x2x128xf32>
    %26 = vector.shape_cast %25 : vector<1x1x2x128xf32> to vector<2x128xf32>
    %27 = arith.subf %26, %12 : vector<2x128xf32>
    %28 = math.exp %27 : vector<2x128xf32>
    %29 = arith.addf %19, %28 : vector<2x128xf32>
    %c1_i32 = arith.constant 1 : i32
    %30 = vector.broadcast %c1_i32 : i32 to vector<2x128xi32>
    %31 = arith.cmpi eq, %1, %30 : vector<2x128xi32>
    %cst_26 = arith.constant 0.000000e+00 : f32
    %32 = vector.broadcast %cst_26 : f32 to vector<2x128xf32>
    %33 = arith.select %31, %27, %32 : vector<2x128xi1>, vector<2x128xf32>
    %34 = arith.addf %24, %33 : vector<2x128xf32>
    %c0_27 = arith.constant 0 : index
    %c2_28 = arith.constant 2 : index
    %c0_29 = arith.constant 0 : index
    %c0_30 = arith.constant 0 : index
    %35 = vector.load %arg2[%c0_27, %c2_28, %c0_29, %c0_30] : memref<1x4x2x128xf32, #tpu.memory_space<vmem>>, vector<1x1x2x128xf32>
    %36 = vector.shape_cast %35 : vector<1x1x2x128xf32> to vector<2x128xf32>
    %37 = arith.subf %36, %12 : vector<2x128xf32>
    %38 = math.exp %37 : vector<2x128xf32>
    %39 = arith.addf %29, %38 : vector<2x128xf32>
    %c2_i32 = arith.constant 2 : i32
    %40 = vector.broadcast %c2_i32 : i32 to vector<2x128xi32>
    %41 = arith.cmpi eq, %1, %40 : vector<2x128xi32>
    %cst_31 = arith.constant 0.000000e+00 : f32
    %42 = vector.broadcast %cst_31 : f32 to vector<2x128xf32>
    %43 = arith.select %41, %37, %42 : vector<2x128xi1>, vector<2x128xf32>
    %44 = arith.addf %34, %43 : vector<2x128xf32>
    %c0_32 = arith.constant 0 : index
    %c3_33 = arith.constant 3 : index
    %c0_34 = arith.constant 0 : index
    %c0_35 = arith.constant 0 : index
    %45 = vector.load %arg2[%c0_32, %c3_33, %c0_34, %c0_35] : memref<1x4x2x128xf32, #tpu.memory_space<vmem>>, vector<1x1x2x128xf32>
    %46 = vector.shape_cast %45 : vector<1x1x2x128xf32> to vector<2x128xf32>
    %47 = arith.subf %46, %12 : vector<2x128xf32>
    %48 = math.exp %47 : vector<2x128xf32>
    %49 = arith.addf %39, %48 : vector<2x128xf32>
    %c3_i32 = arith.constant 3 : i32
    %50 = vector.broadcast %c3_i32 : i32 to vector<2x128xi32>
    %51 = arith.cmpi eq, %1, %50 : vector<2x128xi32>
    %cst_36 = arith.constant 0.000000e+00 : f32
    %52 = vector.broadcast %cst_36 : f32 to vector<2x128xf32>
    %53 = arith.select %51, %47, %52 : vector<2x128xi1>, vector<2x128xf32>
    %54 = arith.addf %44, %53 : vector<2x128xf32>
    %55 = math.log %49 : vector<2x128xf32>
    %56 = arith.subf %55, %54 : vector<2x128xf32>
    %cst_37 = arith.constant dense<0.000000e+00> : vector<128xf32>
    %57 = vector.multi_reduction <add>, %56, %cst_37 [0] : vector<2x128xf32> to vector<128xf32>
    %58 = vector.shape_cast %57 : vector<128xf32> to vector<1x128xf32>
    %c0_38 = arith.constant 0 : index
    %c0_39 = arith.constant 0 : index
    %c0_40 = arith.constant 0 : index
    %c0_41 = arith.constant 0 : index
    %59 = vector.load %arg4[%c0_38, %c0_39, %c0_40, %c0_41] : memref<1x1x1x128xf32, #tpu.memory_space<vmem>>, vector<1x1x1x128xf32>
    %60 = vector.shape_cast %59 : vector<1x1x1x128xf32> to vector<1x128xf32>
    %61 = vector.shape_cast %58 : vector<1x128xf32> to vector<1x1x1x128xf32>
    tpu.vector_store %arg4[%c0_38, %c0_39, %c0_40, %c0_41], %61 {strides = array<i32>} : memref<1x1x1x128xf32, #tpu.memory_space<vmem>>, vector<1x1x1x128xf32>,
    return
  }
  func.func @transform_0(%arg0: i32, %arg1: i32) -> (i32, i32, i32, i32) {
    %c0_i32 = arith.constant 0 : i32
    %c0_i32_0 = arith.constant 0 : i32
    %c0_i32_1 = arith.constant 0 : i32
    return %arg0, %c0_i32, %arg1, %c0_i32_0 : i32, i32, i32, i32
  }
  func.func @transform_1(%arg0: i32, %arg1: i32) -> (i32, i32, i32, i32) {
    %c0_i32 = arith.constant 0 : i32
    %c0_i32_0 = arith.constant 0 : i32
    %c0_i32_1 = arith.constant 0 : i32
    return %arg0, %c0_i32, %arg1, %c0_i32_0 : i32, i32, i32, i32
  }
  func.func @transform_2(%arg0: i32, %arg1: i32) -> (i32, i32, i32, i32) {
    %c0_i32 = arith.constant 0 : i32
    %c0_i32_0 = arith.constant 0 : i32
    %c0_i32_1 = arith.constant 0 : i32
    return %arg0, %arg1, %c0_i32, %c0_i32_0 : i32, i32, i32, i32
  }
}

</mosaic_0001>

<llo_original>
// kernel: focal_loss.1
$region0: #{focal_loss.1}
  #allocation0 [shape = 'u32[]', space=smem, size = 0x4, offset = 0x4, fixed_abs, tag = 'smem constant byte address 0x4 - core index']
  #allocation1 [shape = 'u32[144,128]{1,0:T(1,128)}', space=vmem, size = 0x12000, scoped, tag = 'internal scratch']
  %s0 = inlined_call_operand.vmem [shape: f32[2,4,2,128], index: 0, kind: input, shape index: {}]
  %s1 = inlined_call_operand.vmem [shape: s32[2,1,2,128], index: 1, kind: input, shape index: {}]
  %s2 = inlined_call_operand.vmem [shape: f32[2,1,1,128], index: 2, kind: output, shape index: {}]
  %s3 = sld [smem:[#allocation0]]
  $region41: #{focal_loss.1} parent=0
    _
  %s5 = ssub.s32 1, %s3
  %s6 = scalar_select 0, %s5, %s3
  loop: start=0, step=1, limit=4
  $region2: #{focal_loss.1} parent=0 // loop_pre_header
    _
  $region3: #{focal_loss.1} parent=0 // loop_header
    %s8 = sphi 0, %s12
    %p9 = scmp.ge.s32.totalorder %s8, 4
    %s15 = sphi 0, %s27
    %s16 = sphi 0, %s23
    %s17 = sphi 0, %s15
    %s18 = sphi 0, %s16
    %s19 = sphi 0, %s17
    %s20 = sphi 0, %s18
    %s32 = sphi 0, %s34
    %s35 = sphi 0, %s32
    %s36 = sphi 0, %s35
    %s52 = sphi 0, %s36
    %s60 = sphi 0, %s62
    %s63 = sphi 0, %s60
    %s64 = sphi 0, %s63
    %s80 = sphi 0, %s64
    %s88 = sphi 0, %s90
    %s91 = sphi 0, %s88
    %s92 = sphi 0, %s91
    %s108 = sphi 0, %s92
  $region4: #{focal_loss.1} parent=0 // loop_header_branch
    %11 = sbr.rel (%p9) target = $region8
  $region5: #{focal_loss.1} parent=0 // loop_body
    %s13 = ssub.s32 %s8, 1
    %s14 = ssub.s32 %s8, 2
    %s21 = sadd.s32 1, %s16
    %p22 = scmp.ge.s32.totalorder %s21, 1
    %s23 = scalar_select %p22, 0, %s21
    %s24 = sadd.s32 1, %s15
    %s25 = scalar_select %p22, %s24, %s15
    %p26 = scmp.ge.s32.totalorder %s25, 2
    %s27 = scalar_select %p26, 0, %s25
    %s28 = ssub.s32 %s15, %s27
    %s29 = ssub.s32 %s16, %s23
    %s30 = sor.u32 %s28, %s29
    %p31 = scmp.eq.s32.totalorder %s30, 0
    %s33 = sadd.s32 %s32, 1
    %s34 = scalar_select %p31, %s32, %s33
    %p37 = pneg %p31
    %p38 = scmp.eq.s32.totalorder %s8, 1
    %p39 = por %p37, %p38
    %p40 = scmp.ne.s32.totalorder %s32, %s35
    %p41 = scmp.eq.s32.totalorder %s8, 0
    %p42 = por %p40, %p41
    %p43 = scmp.ne.s32.totalorder %s32, %s35
    %p44 = scmp.eq.s32.totalorder %s13, 1
    %p45 = por %p43, %p44
    %p46 = scmp.ne.s32.totalorder %s35, %s36
    %p47 = scmp.eq.s32.totalorder %s13, 0
    %p48 = por %p46, %p47
    %p49 = scmp.ne.s32.totalorder %s35, %s36
    %p50 = scmp.eq.s32.totalorder %s14, 1
    %p51 = por %p49, %p50
    %p53 = scmp.ne.s32.totalorder %s36, %s52
    %p54 = scmp.eq.s32.totalorder %s14, 0
    %p55 = por %p53, %p54
    %s56 = ssub.s32 %s15, %s27
    %s57 = ssub.s32 %s16, %s23
    %s58 = sor.u32 %s56, %s57
    %p59 = scmp.eq.s32.totalorder %s58, 0
    %s61 = sadd.s32 %s60, 1
    %s62 = scalar_select %p59, %s60, %s61
    %p65 = pneg %p59
    %p66 = scmp.eq.s32.totalorder %s8, 1
    %p67 = por %p65, %p66
    %p68 = scmp.ne.s32.totalorder %s60, %s63
    %p69 = scmp.eq.s32.totalorder %s8, 0
    %p70 = por %p68, %p69
    %p71 = scmp.ne.s32.totalorder %s60, %s63
    %p72 = scmp.eq.s32.totalorder %s13, 1
    %p73 = por %p71, %p72
    %p74 = scmp.ne.s32.totalorder %s63, %s64
    %p75 = scmp.eq.s32.totalorder %s13, 0
    %p76 = por %p74, %p75
    %p77 = scmp.ne.s32.totalorder %s63, %s64
    %p78 = scmp.eq.s32.totalorder %s14, 1
    %p79 = por %p77, %p78
    %p81 = scmp.ne.s32.totalorder %s64, %s80
    %p82 = scmp.eq.s32.totalorder %s14, 0
    %p83 = por %p81, %p82
    %s84 = ssub.s32 %s15, %s27
    %s85 = ssub.s32 %s16, %s23
    %s86 = sor.u32 %s84, %s85
    %p87 = scmp.eq.s32.totalorder %s86, 0
    %s89 = sadd.s32 %s88, 1
    %s90 = scalar_select %p87, %s88, %s89
    %p93 = pneg %p87
    %p94 = scmp.eq.s32.totalorder %s8, 1
    %p95 = por %p93, %p94
    %p96 = scmp.ne.s32.totalorder %s88, %s91
    %p97 = scmp.eq.s32.totalorder %s8, 0
    %p98 = por %p96, %p97
    %p99 = scmp.ne.s32.totalorder %s88, %s91
    %p100 = scmp.eq.s32.totalorder %s13, 1
    %p101 = por %p99, %p100
    %p102 = scmp.ne.s32.totalorder %s91, %s92
    %p103 = scmp.eq.s32.totalorder %s13, 0
    %p104 = por %p102, %p103
    %p105 = scmp.ne.s32.totalorder %s91, %s92
    %p106 = scmp.eq.s32.totalorder %s14, 1
    %p107 = por %p105, %p106
    %p109 = scmp.ne.s32.totalorder %s92, %s108
    %p110 = scmp.eq.s32.totalorder %s14, 0
    %p111 = por %p109, %p110
    %p112 = scmp.le.s32.totalorder 1, %s8
    %p113 = scmp.lt.s32.totalorder %s8, 3
    %p114 = pnand %p112, %p113
    %p115 = pneg %p114
    // Predicated region
    $region9: #{focal_loss.1} parent=5 // pred_check
      _
    $region10: #{focal_loss.1} parent=5 // pred_check_branch
      %117 = sbr.rel (%p114) target = $region12
    $region11: #{focal_loss.1} parent=5 // pred_region
      %s118 = ssub.s32 %s8, 1
    $region12: #{focal_loss.1} parent=5 // pred_fallthru
      _
    %p119 = scmp.lt.s32.totalorder %s8, 2
    // Predicated region
    $region13: #{focal_loss.1} parent=5 // pred_check
      %p120 = pneg %p119
    $region14: #{focal_loss.1} parent=5 // pred_check_branch
      %122 = sbr.rel (%p120) target = $region16
    $region15: #{focal_loss.1} parent=5 // pred_region
      // Predicated region
      $region17: #{focal_loss.1} parent=15 // pred_check
        %p123 = pneg %p42
      $region18: #{focal_loss.1} parent=15 // pred_check_branch
        %125 = sbr.rel (%p123) target = $region20
      $region19: #{focal_loss.1} parent=15 // pred_region
        %p126 = scmp.lt.s32.totalorder %s15, 1
        %s127 = scalar_select %p126, %s15, 1
        %p128 = scmp.lt.s32.totalorder %s16, 0
        %s129 = scalar_select %p128, %s16, 0
        %s130 = smul.addr %s127, 4
        %s131 = sadd.s32 %s129, %s130
        %s132 = smul.addr %s131, 2
        %s133 = scalar_lea.vmem %s0, %s132
      $region20: #{focal_loss.1} parent=15 // pred_fallthru
        _
      // Predicated region
      $region21: #{focal_loss.1} parent=15 // pred_check
        %p134 = pneg %p70
      $region22: #{focal_loss.1} parent=15 // pred_check_branch
        %136 = sbr.rel (%p134) target = $region24
      $region23: #{focal_loss.1} parent=15 // pred_region
        %p137 = scmp.lt.s32.totalorder %s15, 1
        %s138 = scalar_select %p137, %s15, 1
        %p139 = scmp.lt.s32.totalorder %s16, 0
        %s140 = scalar_select %p139, %s16, 0
        %s141 = sadd.s32 %s140, %s138
        %s142 = smul.addr %s141, 2
        %s143 = scalar_lea.vmem %s1, %s142
      $region24: #{focal_loss.1} parent=15 // pred_fallthru
        _
    $region16: #{focal_loss.1} parent=5 // pred_fallthru
      _
    %p144 = scmp.le.s32.totalorder 1, %s8
    %p145 = scmp.lt.s32.totalorder %s8, 3
    %p146 = pnand %p144, %p145
    %p147 = pneg %p146
    // Predicated region
    $region25: #{focal_loss.1} parent=5 // pred_check
      _
    $region26: #{focal_loss.1} parent=5 // pred_check_branch
      %149 = sbr.rel (%p146) target = $region28
    $region27: #{focal_loss.1} parent=5 // pred_region
      %s150 = ssub.s32 %s8, 1
      %p151 = scmp.lt.s32.totalorder %s17, 1
      %s152 = scalar_select %p151, %s17, 1
      %p153 = scmp.lt.s32.totalorder %s18, 0
      %s154 = scalar_select %p153, %s18, 0
      %s155 = smul.addr %s152, 4
      %s156 = sadd.s32 %s154, %s155
      %s157 = smul.addr %s156, 2
      %s158 = scalar_lea.vmem %s0, %s157
      %p159 = pneg %p48
      %p160 = pneg %p45
      %p161 = scmp.lt.s32.totalorder %s17, 1
      %s162 = scalar_select %p161, %s17, 1
      %p163 = scmp.lt.s32.totalorder %s18, 0
      %s164 = scalar_select %p163, %s18, 0
      %s165 = sadd.s32 %s164, %s162
      %s166 = smul.addr %s165, 2
      %s167 = scalar_lea.vmem %s1, %s166
      %p168 = pneg %p76
      %p169 = pneg %p73
      %p170 = pneg %p104
      %p171 = pneg %p101
      %p172 = scmp.lt.s32.totalorder %s17, 1
      %s173 = scalar_select %p172, %s17, 1
      %p174 = scmp.lt.s32.totalorder %s18, 0
      %s175 = scalar_select %p174, %s18, 0
      %s176 = sadd.s32 %s175, %s173
      %s177 = scalar_lea.vmem %s2, %s176
      %p178 = scmp.lt.s32.totalorder %s17, 1
      %s179 = scalar_select %p178, %s17, 1
      %p180 = scmp.lt.s32.totalorder %s18, 0
      %s181 = scalar_select %p180, %s18, 0
      %s182 = smul.addr %s179, 4
      %s183 = sadd.s32 %s181, %s182
      %s184 = smul.addr %s183, 2
      %s185 = scalar_lea.vmem %s0, %s184
      %p186 = scmp.lt.s32.totalorder %s17, 1
      %s187 = scalar_select %p186, %s17, 1
      %p188 = scmp.lt.s32.totalorder %s18, 0
      %s189 = scalar_select %p188, %s18, 0
      %s190 = sadd.s32 %s189, %s187
      %s191 = smul.addr %s190, 2
      %s192 = scalar_lea.vmem %s1, %s191
      %p193 = scmp.lt.s32.totalorder %s17, 1
      %s194 = scalar_select %p193, %s17, 1
      %p195 = scmp.lt.s32.totalorder %s18, 0
      %s196 = scalar_select %p195, %s18, 0
      %s197 = sadd.s32 %s196, %s194
      %s198 = scalar_lea.vmem %s2, %s197
      %v199 = vld [vmem:[%s192] sm:$0x3]
      %v200 = vld [vmem:[%s185] sm:$0x3]
      %s201 = scalar_lea.vmem %s185, 2
      %v202 = vld [vmem:[%s201] sm:$0x3]
      %v203 = vmax.f32 %v200, %v202
      %s204 = scalar_lea.vmem %s185, 4
      %v205 = vld [vmem:[%s204] sm:$0x3]
      %v206 = vmax.f32 %v203, %v205
      %s207 = scalar_lea.vmem %s185, 6
      %v208 = vld [vmem:[%s207] sm:$0x3]
      %v209 = vmax.f32 %v206, %v208
      %v210 = vsub.f32 %v200, %v209
      %v211 = vmul.f32 %v210, 1.442695
      %v212 = vpow.pop %v211
      %v213 = vadd.f32 %v212, 0.0
      %vm214 = vcmp.eq.s32.totalorder %v199, 0
      %v215 = vsel %vm214, %v210, 0.0
      %v216 = vadd.f32 %v215, 0.0
      %v217 = vsub.f32 %v202, %v209
      %v218 = vmul.f32 %v217, 1.442695
      %v219 = vpow.pop %v218
      %v220 = vadd.f32 %v213, %v219
      %vm221 = vcmp.eq.s32.totalorder %v199, 1
      %v222 = vsel %vm221, %v217, 0.0
      %v223 = vadd.f32 %v216, %v222
      %v224 = vsub.f32 %v205, %v209
      %v225 = vmul.f32 %v224, 1.442695
      %v226 = vpow.pop %v225
      %v227 = vadd.f32 %v220, %v226
      %vm228 = vcmp.eq.s32.totalorder %v199, 2
      %v229 = vsel %vm228, %v224, 0.0
      %v230 = vadd.f32 %v223, %v229
      %v231 = vsub.f32 %v208, %v209
      %v232 = vmul.f32 %v231, 1.442695
      %v233 = vpow.pop %v232
      %v234 = vadd.f32 %v227, %v233
      %vm235 = vcmp.eq.s32.totalorder %v199, 3
      %v236 = vsel %vm235, %v231, 0.0
      %v237 = vadd.f32 %v230, %v236
      %v238 = vlog2.pop %v234
      %v239 = vmul.f32 %v238, 0.6931472
      %v240 = vsub.f32 %v239, %v237
      %vm241 = vcmask 1041408
      %v242 = vsel %vm241, %v240, 0.0
      %v243 = vrot.slane %v242, 4
      %v244 = vadd.f32 %v242, %v243
      %v245 = vrot.slane %v244, 2
      %v246 = vadd.f32 %v244, %v245
      %v247 = vrot.slane %v246, 1
      %v248 = vadd.f32 %v246, %v247
      %249 = vst [vmem:[%s198] sm:$0x1] %v248
      %p250 = scmp.lt.s32.totalorder %s17, 1
      %s251 = scalar_select %p250, %s17, 1
      %p252 = scmp.lt.s32.totalorder %s18, 0
      %s253 = scalar_select %p252, %s18, 0
      %s254 = sadd.s32 %s253, %s251
      %s255 = scalar_lea.vmem %s2, %s254
      // Predicated region
      $region29: #{focal_loss.1} parent=27 // pred_check
        %p256 = pneg %p101
      $region30: #{focal_loss.1} parent=27 // pred_check_branch
        %258 = sbr.rel (%p256) target = $region32
      $region31: #{focal_loss.1} parent=27 // pred_region
        _
      $region32: #{focal_loss.1} parent=27 // pred_fallthru
        _
    $region28: #{focal_loss.1} parent=5 // pred_fallthru
      _
    %p259 = scmp.le.s32.totalorder 2, %s8
    // Predicated region
    $region33: #{focal_loss.1} parent=5 // pred_check
      %p260 = pneg %p259
    $region34: #{focal_loss.1} parent=5 // pred_check_branch
      %262 = sbr.rel (%p260) target = $region36
    $region35: #{focal_loss.1} parent=5 // pred_region
      %s263 = ssub.s32 %s8, 2
      // Predicated region
      $region37: #{focal_loss.1} parent=35 // pred_check
        %p264 = pneg %p107
      $region38: #{focal_loss.1} parent=35 // pred_check_branch
        %266 = sbr.rel (%p264) target = $region40
      $region39: #{focal_loss.1} parent=35 // pred_region
        %p267 = scmp.lt.s32.totalorder %s19, 1
        %s268 = scalar_select %p267, %s19, 1
        %p269 = scmp.lt.s32.totalorder %s20, 0
        %s270 = scalar_select %p269, %s20, 0
        %s271 = sadd.s32 %s270, %s268
        %s272 = scalar_lea.vmem %s2, %s271
      $region40: #{focal_loss.1} parent=35 // pred_fallthru
        _
    $region36: #{focal_loss.1} parent=5 // pred_fallthru
      _
  $region6: #{focal_loss.1} parent=0 // loop_footer
    %s12 = sadd.s32 1, %s8
  $region7: #{focal_loss.1} parent=0 // loop_footer_branch
    %7 = sbr.rel target = $region3
  $region8: #{focal_loss.1} parent=0 // loop_exit
    _

</llo_original>
